<compile_context>
chip_gen: v6e
topology: v6e:2x2x1
jax: 0.10.0
libtpu: 0.0.40
codegen_flags: <defaults>
</compile_context>

<pallas_src>
import jax
import jax.numpy as jnp
from jax.experimental import pallas as pl
from jax.experimental.pallas import tpu as pltpu

BN_EPS = 1e-5


# ----------------------------------------------------------------------------
# Kernel
# ----------------------------------------------------------------------------
def _fs_relation_kernel(x_ref, sf_ref, wcat_ref, bcat_ref, o_ref):
    w = wcat_ref[...]                          # (2*Cout, Cin), matmul dtype
    x = x_ref[0]                               # (Cin, TP), HBM-native dtype
    if x.dtype != w.dtype:
        x = x.astype(w.dtype)                  # in-VMEM cast, no extra HBM pass
    cout = o_ref.shape[1]

    # Fused content-encoder + feature-re-encoder 1x1 convs (+ folded BN) + ReLU:
    # one MXU matmul instead of two; f32 accumulation and epilogue.
    h = jnp.dot(w, x, preferred_element_type=jnp.float32)
    h = jnp.maximum(h + bcat_ref[...], 0.0)    # (2*Cout, TP), f32

    cf = h[:cout]                              # content features     (Cout, TP)
    pf = h[cout:]                              # re-encoded features  (Cout, TP)

    # relation = sigmoid( sum_c sf * cf ): channel reduction on the MXU.
    # sf is broadcast to 8 sublanes (MXU M granularity) -> (8, Cout) @ (Cout, TP),
    # row 0 is the wanted logit; sigmoid runs on the EUP.
    sf8 = jnp.broadcast_to(sf_ref[0], (8, cout)).astype(jnp.float32)
    logits = jnp.dot(sf8, cf, preferred_element_type=jnp.float32)[0:1]  # (1, TP)
    rel = jax.nn.sigmoid(logits)

    if o_ref.dtype == jnp.bfloat16:
        # Packed bf16 final multiply + store (v6e/v7x fast path).
        o_ref[0] = rel.astype(jnp.bfloat16) * pf.astype(jnp.bfloat16)
    else:
        o_ref[0] = (rel * pf).astype(o_ref.dtype)


# ----------------------------------------------------------------------------
# Tiling / VMEM heuristics
# ----------------------------------------------------------------------------
def _vmem_budgets():
    """(vmem_limit_bytes, per-step tile budget) -- generation aware."""
    cap = 128 * 1024 * 1024
    try:
        cap = int(getattr(pltpu.get_tpu_info(), "vmem_capacity_bytes", cap))
    except Exception:
        pass
    if cap <= 64 * 1024 * 1024:                # v7x-class: 64 MiB physical VMEM
        return 40 * 1024 * 1024, 18 * 1024 * 1024
    return 64 * 1024 * 1024, 28 * 1024 * 1024  # v5e/v6e: 128 MiB physical VMEM


def _pick_pixel_tile(p, n, cin, cout, x_bytes, w_bytes, out_bytes, budget_bytes):
    """Largest lane-dense pixel tile whose full live set fits the VMEM budget."""
    if p <= 128:
        return p                               # full-extent block (legal)
    cout2 = 2 * cout

    def need(tp):
        return (2 * cin * tp * x_bytes         # double-buffered x blocks
                + 2 * cout * tp * out_bytes    # double-buffered out blocks
                + 2 * cout2 * cin * w_bytes    # double-buffered fused weights
                + cout2 * tp * 4               # f32 intermediate h
                + (cout + 2) * tp * 4          # epilogue temporaries (rel, cast)
                + 2 * (cout2 + 8 * cout) * 4   # bias + sf blocks
                + 64 * 1024)                   # slack

    tp = 128
    for cand in (2048, 1024, 512, 256, 128):
        if need(cand) <= budget_bytes:
            tp = cand
            break
    # Never exceed the array: largest multiple of 128 that is <= p.
    tp = min(tp, (p // 128) * 128)
    # v7x: keep >= 2 parallel grid points so both TensorCores get work.
    while n * pl.cdiv(p, tp) < 2 and tp > 128:
        tp = max(128, ((tp // 2) // 128) * 128)
    return tp


# ----------------------------------------------------------------------------
# Wrapper
# ----------------------------------------------------------------------------
def fs_relation_level(x_ncp, sf_nc, w_cat, b_cat, *,
                      matmul_dtype=jnp.bfloat16, out_dtype=None):
    """x_ncp: (N, Cin, P); sf_nc: (N, Cout); w_cat: (2*Cout, Cin); b_cat: (2*Cout,)."""
    n, cin, p = x_ncp.shape
    cout2 = w_cat.shape[0]
    cout = cout2 // 2
    if matmul_dtype is None:
        matmul_dtype = x_ncp.dtype
    if out_dtype is None:
        out_dtype = matmul_dtype

    # Weights/bias/sf are tiny: prepared in the wrapper.  x is NOT copied/padded
    # here -- it is read at its HBM dtype and cast in-kernel if needed; ragged
    # last pixel tiles are handled by the cdiv grid (OOB input garbage only
    # reaches output columns that the masked writeback drops).
    w_cat = w_cat.astype(matmul_dtype)
    b_col = b_cat[:, None].astype(jnp.float32)           # (2*Cout, 1)
    sf_lane = sf_nc[:, None, :].astype(jnp.float32)      # (N, 1, Cout), lane-dense

    x_bytes = jnp.dtype(x_ncp.dtype).itemsize
    w_bytes = jnp.dtype(matmul_dtype).itemsize
    out_bytes = jnp.dtype(out_dtype).itemsize

    vmem_limit, tile_budget = _vmem_budgets()
    tp = _pick_pixel_tile(p, n, cin, cout, x_bytes, w_bytes, out_bytes, tile_budget)
    num_pt = pl.cdiv(p, tp)
    grid = (num_pt, n)        # pixel tiles leading: larger parallel extent first

    flops = 2 * n * p * cin * cout2 + 2 * n * p * cout + 4 * n * p * cout
    bytes_accessed = (n * cin * p * x_bytes + cout2 * cin * w_bytes
                      + n * cout * 4 + cout2 * 4 + n * cout * p * out_bytes)

    out = pl.pallas_call(
        _fs_relation_kernel,
        out_shape=jax.ShapeDtypeStruct((n, cout, p), out_dtype),
        grid_spec=pltpu.PrefetchScalarGridSpec(
            num_scalar_prefetch=0,
            grid=grid,
            in_specs=[
                pl.BlockSpec((1, cin, tp), lambda m, b: (b, 0, m)),
                pl.BlockSpec((1, 1, cout), lambda m, b: (b, 0, 0)),
                pl.BlockSpec((cout2, cin), lambda m, b: (0, 0)),
                pl.BlockSpec((cout2, 1), lambda m, b: (0, 0)),
            ],
            out_specs=pl.BlockSpec((1, cout, tp), lambda m, b: (b, 0, m)),
        ),
        compiler_params=pltpu.CompilerParams(
            dimension_semantics=("parallel", "parallel"),
            vmem_limit_bytes=vmem_limit),
        cost_estimate=pl.CostEstimate(
            flops=flops, transcendentals=n * p, bytes_accessed=bytes_accessed),
    )(x_ncp, sf_lane, w_cat, b_col)
    return out


def fs_relation_forward(params, scene_feature_nchw, features_nchw, *,
                        matmul_dtype=jnp.bfloat16, out_dtype=None):
    """scene_feature: (N, S, 1, 1); features: list of (N, Ci, Hi, Wi)
    -> list of (N, O, Hi, Wi).  For maximum HBM savings pass bf16 features."""
    n = scene_feature_nchw.shape[0]
    scene = scene_feature_nchw.reshape(n, -1).astype(jnp.float32)   # (N, S)
    outs = []
    for i, feat in enumerate(features_nchw):
        _, c, h, w = feat.shape
        x_ncp = feat.reshape(n, c, h * w)               # P on lanes, no transpose
        w1, b1, w2, b2 = params["scene"][i]
        # Tiny scene-encoder matmuls: plain JAX, not worth a pallas_call launch.
        sf = jnp.maximum(scene @ w1 + b1, 0.0) @ w2 + b2            # (N, O)
        w_cat, b_cat = params["fused"][i]
        out_ncp = fs_relation_level(x_ncp, sf, w_cat, b_cat,
                                    matmul_dtype=matmul_dtype, out_dtype=out_dtype)
        outs.append(out_ncp.reshape(n, -1, h, w))
    return outs


# ----------------------------------------------------------------------------
# Parameter construction (shapes follow the PyTorch __init__)
# ----------------------------------------------------------------------------
def _conv1x1_params(key, cin, cout):
    kw, kb = jax.random.split(key)
    w = jax.random.normal(kw, (cout, cin), jnp.float32) * (1.0 / jnp.sqrt(cin))
    b = jax.random.normal(kb, (cout,), jnp.float32) * 0.1
    return w, b


def _scene_conv_params(key, cin, cout):
    kw, kb = jax.random.split(key)
    w = jax.random.normal(kw, (cin, cout), jnp.float32) * (1.0 / jnp.sqrt(cin))
    b = jax.random.normal(kb, (cout,), jnp.float32) * 0.1
    return w, b


def _bn_params(key, c):
    k1, k2, k3, k4 = jax.random.split(key, 4)
    gamma = 1.0 + 0.1 * jax.random.normal(k1, (c,), jnp.float32)
    beta = 0.1 * jax.random.normal(k2, (c,), jnp.float32)
    mean = 0.1 * jax.random.normal(k3, (c,), jnp.float32)
    var = 1.0 + 0.5 * jax.random.uniform(k4, (c,), jnp.float32)
    return gamma, beta, mean, var


def _fold_bn(w, b, gamma, beta, mean, var):
    scale = gamma / jnp.sqrt(var + BN_EPS)               # (Cout,)
    return w * scale[:, None], (b - mean) * scale + beta


def init_fs_relation_params(key, scene_channels, in_channels_list, out_channels):
    params = {"scene": [], "content": [], "reenc": [], "fused": []}
    for i, cin in enumerate(in_channels_list):
        k = jax.random.fold_in(key, i)
        ks = jax.random.split(k, 6)
        # scene encoder i: Conv(S->O), ReLU, Conv(O->O)
        w1, b1 = _scene_conv_params(ks[0], scene_channels, out_channels)
        w2, b2 = _scene_conv_params(ks[1], out_channels, out_channels)
        params["scene"].append((w1, b1, w2, b2))
        # content encoder i: Conv(cin->O) + BN + ReLU  (BN folded, eval mode)
        wc, bc = _fold_bn(*_conv1x1_params(ks[2], cin, out_channels),
                          *_bn_params(ks[3], out_channels))
        params["content"].append((wc, bc))
        # feature re-encoder i: Conv(cin->O) + BN + ReLU  (BN folded, eval mode)
        wf, bf = _fold_bn(*_conv1x1_params(ks[4], cin, out_channels),
                          *_bn_params(ks[5], out_channels))
        params["reenc"].append((wf, bf))
        # fused weights for the kernel: one (2*O, cin) matmul per tile
        params["fused"].append((jnp.concatenate([wc, wf], axis=0),
                                jnp.concatenate([bc, bf], axis=0)))
    return params


# ----------------------------------------------------------------------------
# Pure-JAX reference (mirrors the PyTorch forward, NCHW, f32 highest precision)
# ----------------------------------------------------------------------------
def fs_relation_reference(params, scene_feature_nchw, features_nchw):
    hi = jax.lax.Precision.HIGHEST
    n = scene_feature_nchw.shape[0]
    scene = scene_feature_nchw.reshape(n, -1).astype(jnp.float32)
    outs = []
    for i, feat in enumerate(features_nchw):
        _, c, h, w = feat.shape
        x = feat.reshape(n, c, h * w).astype(jnp.float32)          # (N, Cin, P)
        w1, b1, w2, b2 = params["scene"][i]
        sf = jnp.maximum(scene @ w1 + b1, 0.0) @ w2 + b2           # (N, O)
        wc, bc = params["content"][i]
        wf, bf = params["reenc"][i]
        cf = jnp.maximum(jnp.einsum("oc,ncp->nop", wc, x, precision=hi)
                         + bc[None, :, None], 0.0)
        pf = jnp.maximum(jnp.einsum("oc,ncp->nop", wf, x, precision=hi)
                         + bf[None, :, None], 0.0)
        rel = jax.nn.sigmoid(jnp.sum(sf[:, :, None] * cf, axis=1, keepdims=True))
        outs.append((rel * pf).reshape(n, -1, h, w))
    return outs


# ----------------------------------------------------------------------------
if __name__ == "__main__":
    key = jax.random.PRNGKey(0)
    N = 2
    scene_embedding_channels = 32
    in_channels_list = [16, 8, 8]
    out_channels = 32
    # P = 256 (lane-aligned), 144 (ragged last 128-tile), 64 (full-extent tile)
    spatial = [(16, 16), (12, 12), (8, 8)]

    kp, ksc, kf = jax.random.split(key, 3)
    params = init_fs_relation_params(kp, scene_embedding_channels,
                                     in_channels_list, out_channels)

    scene_feature = jax.random.normal(
        ksc, (N, scene_embedding_channels, 1, 1), jnp.float32)
    features = [
        jax.random.normal(jax.random.fold_in(kf, i),
                          (N, c, h, w), jnp.float32)
        for i, (c, (h, w)) in enumerate(zip(in_channels_list, spatial))
    ]

    refs = fs_relation_reference(params, scene_feature, features)

    # --- f32 path: numerical parity with the f32 reference (tight tolerance) ---
    outs = fs_relation_forward(params, scene_feature, features,
                               matmul_dtype=jnp.float32, out_dtype=jnp.float32)
    outs = [jax.block_until_ready(o) for o in outs]
    for o, r in zip(outs, refs):
        assert o.shape == r.shape, (o.shape, r.shape)
        assert jnp.allclose(o, r, rtol=1e-4, atol=1e-4), \
            float(jnp.max(jnp.abs(o - r)))

    # --- default fast path: bf16 features end-to-end, bf16 MXU inputs, f32
    # accumulation, bf16 outputs -- looser tolerance vs the f32 reference. ---
    features_bf16 = [f.astype(jnp.bfloat16) for f in features]
    outs_fast = fs_relation_forward(params, scene_feature, features_bf16)
    outs_fast = [jax.block_until_ready(o) for o in outs_fast]
    for o, r in zip(outs_fast, refs):
        assert o.shape == r.shape, (o.shape, r.shape)
        assert o.dtype == jnp.bfloat16, o.dtype
        assert jnp.allclose(o.astype(jnp.float32), r, rtol=1e-1, atol=1e-1), \
            float(jnp.max(jnp.abs(o.astype(jnp.float32) - r)))

    print("KERNEL_OK")
</pallas_src>

<mosaic_0001>
module attributes {stable_mosaic.version = 11 : i64} {
  func.func @_fs_relation_kernel(%arg0: i32, %arg1: i32, %arg2: memref<1x16x256xf32, #tpu.memory_space<vmem>>, %arg3: memref<1x1x32xf32, #tpu.memory_space<vmem>>, %arg4: memref<64x16xf32, #tpu.memory_space<vmem>>, %arg5: memref<64x1xf32, #tpu.memory_space<vmem>>, %arg6: memref<1x32x256xf32, #tpu.memory_space<vmem>>) attributes {dimension_semantics = [#tpu.dimension_semantics<parallel>, #tpu.dimension_semantics<parallel>], iteration_bounds = array<i64: 1, 2>, scalar_prefetch = 0 : i64, scratch_operands = 0 : i64, tpu.core_type = #tpu.core_type<tc>, window_params = [{transform_indices = @transform_0, window_bounds = array<i64: 1, 16, 256>}, {transform_indices = @transform_1, window_bounds = array<i64: 1, 1, 32>}, {pipeline_mode = #tpu.pipeline_mode<synchronous>, transform_indices = @transform_2, window_bounds = array<i64: 64, 16>}, {pipeline_mode = #tpu.pipeline_mode<synchronous>, transform_indices = @transform_3, window_bounds = array<i64: 64, 1>}, {transform_indices = @transform_4, window_bounds = array<i64: 1, 32, 256>}]} {
    %c0 = arith.constant 0 : index
    %c0_0 = arith.constant 0 : index
    %0 = vector.load %arg4[%c0, %c0_0] : memref<64x16xf32, #tpu.memory_space<vmem>>, vector<64x16xf32>
    %c0_1 = arith.constant 0 : index
    %c0_2 = arith.constant 0 : index
    %c0_3 = arith.constant 0 : index
    %1 = vector.load %arg2[%c0_1, %c0_2, %c0_3] : memref<1x16x256xf32, #tpu.memory_space<vmem>>, vector<1x16x256xf32>
    %2 = vector.shape_cast %1 : vector<1x16x256xf32> to vector<16x256xf32>
    %cst = arith.constant dense<0.000000e+00> : vector<64x256xf32>
    %3 = tpu.matmul %0, %2, %cst {dimension_numbers = #tpu.dot_dimension_numbers<[1], [0], [0], [1], [0, 0, 1, 1], [], []>} : vector<64x16xf32>, vector<16x256xf32>, vector<64x256xf32> -> vector<64x256xf32>
    %c0_4 = arith.constant 0 : index
    %c0_5 = arith.constant 0 : index
    %4 = vector.load %arg5[%c0_4, %c0_5] : memref<64x1xf32, #tpu.memory_space<vmem>>, vector<64x1xf32>
    %5 = vector.broadcast %4 : vector<64x1xf32> to vector<64x256xf32>
    %6 = arith.addf %3, %5 : vector<64x256xf32>
    %cst_6 = arith.constant 0.000000e+00 : f32
    %7 = vector.broadcast %cst_6 : f32 to vector<64x256xf32>
    %8 = arith.maximumf %6, %7 : vector<64x256xf32>
    %9 = vector.extract_strided_slice %8 {offsets = [0, 0], sizes = [32, 256], strides = [1, 1]} : vector<64x256xf32> to vector<32x256xf32>
    %10 = vector.extract_strided_slice %8 {offsets = [32, 0], sizes = [32, 256], strides = [1, 1]} : vector<64x256xf32> to vector<32x256xf32>
    %c0_7 = arith.constant 0 : index
    %c0_8 = arith.constant 0 : index
    %c0_9 = arith.constant 0 : index
    %11 = vector.load %arg3[%c0_7, %c0_8, %c0_9] : memref<1x1x32xf32, #tpu.memory_space<vmem>>, vector<1x1x32xf32>
    %12 = vector.shape_cast %11 : vector<1x1x32xf32> to vector<1x32xf32>
    %13 = vector.shape_cast %12 : vector<1x32xf32> to vector<1x32xf32>
    %14 = vector.broadcast %13 : vector<1x32xf32> to vector<8x32xf32>
    %cst_10 = arith.constant dense<0.000000e+00> : vector<8x256xf32>
    %15 = tpu.matmul %14, %9, %cst_10 {dimension_numbers = #tpu.dot_dimension_numbers<[1], [0], [0], [1], [0, 0, 1, 1], [], []>} : vector<8x32xf32>, vector<32x256xf32>, vector<8x256xf32> -> vector<8x256xf32>
    %16 = vector.extract_strided_slice %15 {offsets = [0, 0], sizes = [1, 256], strides = [1, 1]} : vector<8x256xf32> to vector<1x256xf32>
    %17 = arith.negf %16 : vector<1x256xf32>
    %18 = math.exp %17 : vector<1x256xf32>
    %cst_11 = arith.constant 1.000000e+00 : f32
    %19 = vector.broadcast %cst_11 : f32 to vector<1x256xf32>
    %20 = arith.addf %19, %18 : vector<1x256xf32>
    %21 = arith.divf %19, %20 : vector<1x256xf32>
    %22 = vector.broadcast %21 : vector<1x256xf32> to vector<32x256xf32>
    %23 = arith.mulf %22, %10 : vector<32x256xf32>
    %c0_12 = arith.constant 0 : index
    %c0_13 = arith.constant 0 : index
    %c0_14 = arith.constant 0 : index
    %24 = vector.load %arg6[%c0_12, %c0_13, %c0_14] : memref<1x32x256xf32, #tpu.memory_space<vmem>>, vector<1x32x256xf32>
    %25 = vector.shape_cast %24 : vector<1x32x256xf32> to vector<32x256xf32>
    %26 = vector.shape_cast %23 : vector<32x256xf32> to vector<1x32x256xf32>
    tpu.vector_store %arg6[%c0_12, %c0_13, %c0_14], %26 {strides = array<i32>} : memref<1x32x256xf32, #tpu.memory_space<vmem>>, vector<1x32x256xf32>,
    return
  }
  func.func @transform_0(%arg0: i32, %arg1: i32) -> (i32, i32, i32) {
    %c0_i32 = arith.constant 0 : i32
    %c0_i32_0 = arith.constant 0 : i32
    return %arg1, %c0_i32, %arg0 : i32, i32, i32
  }
  func.func @transform_1(%arg0: i32, %arg1: i32) -> (i32, i32, i32) {
    %c0_i32 = arith.constant 0 : i32
    %c0_i32_0 = arith.constant 0 : i32
    %c0_i32_1 = arith.constant 0 : i32
    return %arg1, %c0_i32, %c0_i32_0 : i32, i32, i32
  }
  func.func @transform_2(%arg0: i32, %arg1: i32) -> (i32, i32) {
    %c0_i32 = arith.constant 0 : i32
    %c0_i32_0 = arith.constant 0 : i32
    %c0_i32_1 = arith.constant 0 : i32
    return %c0_i32, %c0_i32_0 : i32, i32
  }
  func.func @transform_3(%arg0: i32, %arg1: i32) -> (i32, i32) {
    %c0_i32 = arith.constant 0 : i32
    %c0_i32_0 = arith.constant 0 : i32
    %c0_i32_1 = arith.constant 0 : i32
    return %c0_i32, %c0_i32_0 : i32, i32
  }
  func.func @transform_4(%arg0: i32, %arg1: i32) -> (i32, i32, i32) {
    %c0_i32 = arith.constant 0 : i32
    %c0_i32_0 = arith.constant 0 : i32
    return %arg1, %c0_i32, %arg0 : i32, i32, i32
  }
}

</mosaic_0001>

<llo_original>
// kernel: tpu_custom_call.1
$region0: #{tpu_custom_call.1}
  #allocation0 [shape = 'u32[]', space=smem, size = 0x4, offset = 0x4, fixed_abs, tag = 'smem constant byte address 0x4 - core index']
  #allocation1 [shape = 'u32[144,128]{1,0:T(1,128)}', space=vmem, size = 0x12000, scoped, tag = 'internal scratch']
  %s0 = inlined_call_operand.vmem [shape: f32[2,16,256], index: 0, kind: input, shape index: {}]
  %s1 = inlined_call_operand.vmem [shape: f32[2,1,32], index: 1, kind: input, shape index: {}]
  %s2 = inlined_call_operand.vmem [shape: f32[64,16], index: 2, kind: input, shape index: {}]
  %s3 = inlined_call_operand.vmem [shape: f32[64,1], index: 3, kind: input, shape index: {}]
  %s4 = inlined_call_operand.hbm [shape: f32[2,32,256], index: 4, kind: output, shape index: {}]
  %s5 = sld [smem:[#allocation0]]
  $region49: #{tpu_custom_call.1} parent=0
    _
  %s7 = ssub.s32 1, %s5
  %s8 = scalar_select 0, %s7, %s5
  $region1: #{tpu_custom_call.1} parent=0
    #allocation2 [shape = 'u8[65536]{0}', space=vmem, size = 0x10000, scoped, tag = 'output window, operand 0']
    #allocation3 [shape = 's32[2]{0}', space=sflag, size = 0x8, scoped, tag = 'scoped memory for tpu_custom_call.1']
    %9 = vsyncpa [#allocation3], 0
    %s10 = scalar_lea.sflag [#allocation3], 1
    %11 = vsyncpa %s10, 0
    loop: start=0, step=1, limit=4
    $region2: #{tpu_custom_call.1} parent=1 // loop_pre_header
      _
    $region3: #{tpu_custom_call.1} parent=1 // loop_header
      %s13 = sphi 0, %s17
      %p14 = scmp.ge.s32.totalorder %s13, 4
      %s20 = sphi 0, %s32
      %s21 = sphi 0, %s28
      %s22 = sphi 0, %s20
      %s23 = sphi 0, %s21
      %s24 = sphi 0, %s22
      %s25 = sphi 0, %s23
      %s37 = sphi 0, %s39
      %s40 = sphi 0, %s37
      %s41 = sphi 0, %s40
      %s57 = sphi 0, %s41
      %s63 = sphi 0, %s65
      %s66 = sphi 0, %s63
      %s67 = sphi 0, %s66
      %s83 = sphi 0, %s67
      %s87 = sphi 0, %s87
      %s89 = sphi 0, %s87
      %s90 = sphi 0, %s89
      %s104 = sphi 0, %s90
      %s108 = sphi 0, %s108
      %s110 = sphi 0, %s108
      %s111 = sphi 0, %s110
      %s125 = sphi 0, %s111
      %s133 = sphi 0, %s135
      %s136 = sphi 0, %s133
      %s137 = sphi 0, %s136
      %s153 = sphi 0, %s137
    $region4: #{tpu_custom_call.1} parent=1 // loop_header_branch
      %16 = sbr.rel (%p14) target = $region8
    $region5: #{tpu_custom_call.1} parent=1 // loop_body
      %s18 = ssub.s32 %s13, 1
      %s19 = ssub.s32 %s13, 2
      %s26 = sadd.s32 1, %s21
      %p27 = scmp.ge.s32.totalorder %s26, 2
      %s28 = scalar_select %p27, 0, %s26
      %s29 = sadd.s32 1, %s20
      %s30 = scalar_select %p27, %s29, %s20
      %p31 = scmp.ge.s32.totalorder %s30, 1
      %s32 = scalar_select %p31, 0, %s30
      %s33 = ssub.s32 %s21, %s28
      %s34 = ssub.s32 %s20, %s32
      %s35 = sor.u32 %s33, %s34
      %p36 = scmp.eq.s32.totalorder %s35, 0
      %s38 = sadd.s32 %s37, 1
      %s39 = scalar_select %p36, %s37, %s38
      %p42 = pneg %p36
      %p43 = scmp.eq.s32.totalorder %s13, 1
      %p44 = por %p42, %p43
      %p45 = scmp.ne.s32.totalorder %s37, %s40
      %p46 = scmp.eq.s32.totalorder %s13, 0
      %p47 = por %p45, %p46
      %p48 = scmp.ne.s32.totalorder %s37, %s40
      %p49 = scmp.eq.s32.totalorder %s18, 1
      %p50 = por %p48, %p49
      %p51 = scmp.ne.s32.totalorder %s40, %s41
      %p52 = scmp.eq.s32.totalorder %s18, 0
      %p53 = por %p51, %p52
      %p54 = scmp.ne.s32.totalorder %s40, %s41
      %p55 = scmp.eq.s32.totalorder %s19, 1
      %p56 = por %p54, %p55
      %p58 = scmp.ne.s32.totalorder %s41, %s57
      %p59 = scmp.eq.s32.totalorder %s19, 0
      %p60 = por %p58, %p59
      %s61 = ssub.s32 %s21, %s28
      %p62 = scmp.eq.s32.totalorder %s61, 0
      %s64 = sadd.s32 %s63, 1
      %s65 = scalar_select %p62, %s63, %s64
      %p68 = pneg %p62
      %p69 = scmp.eq.s32.totalorder %s13, 1
      %p70 = por %p68, %p69
      %p71 = scmp.ne.s32.totalorder %s63, %s66
      %p72 = scmp.eq.s32.totalorder %s13, 0
      %p73 = por %p71, %p72
      %p74 = scmp.ne.s32.totalorder %s63, %s66
      %p75 = scmp.eq.s32.totalorder %s18, 1
      %p76 = por %p74, %p75
      %p77 = scmp.ne.s32.totalorder %s66, %s67
      %p78 = scmp.eq.s32.totalorder %s18, 0
      %p79 = por %p77, %p78
      %p80 = scmp.ne.s32.totalorder %s66, %s67
      %p81 = scmp.eq.s32.totalorder %s19, 1
      %p82 = por %p80, %p81
      %p84 = scmp.ne.s32.totalorder %s67, %s83
      %p85 = scmp.eq.s32.totalorder %s19, 0
      %p86 = por %p84, %p85
      %s88 = sadd.s32 %s87, 1
      %p91 = scmp.eq.s32.totalorder %s13, 1
      %p92 = scmp.ne.s32.totalorder %s87, %s89
      %p93 = scmp.eq.s32.totalorder %s13, 0
      %p94 = por %p92, %p93
      %p95 = scmp.ne.s32.totalorder %s87, %s89
      %p96 = scmp.eq.s32.totalorder %s18, 1
      %p97 = por %p95, %p96
      %p98 = scmp.ne.s32.totalorder %s89, %s90
      %p99 = scmp.eq.s32.totalorder %s18, 0
      %p100 = por %p98, %p99
      %p101 = scmp.ne.s32.totalorder %s89, %s90
      %p102 = scmp.eq.s32.totalorder %s19, 1
      %p103 = por %p101, %p102
      %p105 = scmp.ne.s32.totalorder %s90, %s104
      %p106 = scmp.eq.s32.totalorder %s19, 0
      %p107 = por %p105, %p106
      %s109 = sadd.s32 %s108, 1
      %p112 = scmp.eq.s32.totalorder %s13, 1
      %p113 = scmp.ne.s32.totalorder %s108, %s110
      %p114 = scmp.eq.s32.totalorder %s13, 0
      %p115 = por %p113, %p114
      %p116 = scmp.ne.s32.totalorder %s108, %s110
      %p117 = scmp.eq.s32.totalorder %s18, 1
      %p118 = por %p116, %p117
      %p119 = scmp.ne.s32.totalorder %s110, %s111
      %p120 = scmp.eq.s32.totalorder %s18, 0
      %p121 = por %p119, %p120
      %p122 = scmp.ne.s32.totalorder %s110, %s111
      %p123 = scmp.eq.s32.totalorder %s19, 1
      %p124 = por %p122, %p123
      %p126 = scmp.ne.s32.totalorder %s111, %s125
      %p127 = scmp.eq.s32.totalorder %s19, 0
      %p128 = por %p126, %p127
      %s129 = ssub.s32 %s21, %s28
      %s130 = ssub.s32 %s20, %s32
      %s131 = sor.u32 %s129, %s130
      %p132 = scmp.eq.s32.totalorder %s131, 0
      %s134 = sadd.s32 %s133, 1
      %s135 = scalar_select %p132, %s133, %s134
      %p138 = pneg %p132
      %p139 = scmp.eq.s32.totalorder %s13, 1
      %p140 = por %p138, %p139
      %p141 = scmp.ne.s32.totalorder %s133, %s136
      %p142 = scmp.eq.s32.totalorder %s13, 0
      %p143 = por %p141, %p142
      %p144 = scmp.ne.s32.totalorder %s133, %s136
      %p145 = scmp.eq.s32.totalorder %s18, 1
      %p146 = por %p144, %p145
      %p147 = scmp.ne.s32.totalorder %s136, %s137
      %p148 = scmp.eq.s32.totalorder %s18, 0
      %p149 = por %p147, %p148
      %p150 = scmp.ne.s32.totalorder %s136, %s137
      %p151 = scmp.eq.s32.totalorder %s19, 1
      %p152 = por %p150, %p151
      %p154 = scmp.ne.s32.totalorder %s137, %s153
      %p155 = scmp.eq.s32.totalorder %s19, 0
      %p156 = por %p154, %p155
      %p157 = scmp.le.s32.totalorder 1, %s13
      %p158 = scmp.lt.s32.totalorder %s13, 3
      %p159 = pnand %p157, %p158
      %p160 = pneg %p159
      // Predicated region
      $region9: #{tpu_custom_call.1} parent=5 // pred_check
        _
      $region10: #{tpu_custom_call.1} parent=5 // pred_check_branch
        %162 = sbr.rel (%p159) target = $region12
      $region11: #{tpu_custom_call.1} parent=5 // pred_region
        %s163 = ssub.s32 %s13, 1
        // Predicated region
        $region13: #{tpu_custom_call.1} parent=11 // pred_check
          %p164 = pneg %p100
        $region14: #{tpu_custom_call.1} parent=11 // pred_check_branch
          %166 = sbr.rel (%p164) target = $region16
        $region15: #{tpu_custom_call.1} parent=11 // pred_region
          _
        $region16: #{tpu_custom_call.1} parent=11 // pred_fallthru
          _
        // Predicated region
        $region17: #{tpu_custom_call.1} parent=11 // pred_check
          %p167 = pneg %p121
        $region18: #{tpu_custom_call.1} parent=11 // pred_check_branch
          %169 = sbr.rel (%p167) target = $region20
        $region19: #{tpu_custom_call.1} parent=11 // pred_region
          _
        $region20: #{tpu_custom_call.1} parent=11 // pred_fallthru
          _
      $region12: #{tpu_custom_call.1} parent=5 // pred_fallthru
        _
      %p170 = scmp.lt.s32.totalorder %s13, 2
      // Predicated region
      $region21: #{tpu_custom_call.1} parent=5 // pred_check
        %p171 = pneg %p170
      $region22: #{tpu_custom_call.1} parent=5 // pred_check_branch
        %173 = sbr.rel (%p171) target = $region24
      $region23: #{tpu_custom_call.1} parent=5 // pred_region
        // Predicated region
        $region25: #{tpu_custom_call.1} parent=23 // pred_check
          %p174 = pneg %p47
        $region26: #{tpu_custom_call.1} parent=23 // pred_check_branch
          %176 = sbr.rel (%p174) target = $region28
        $region27: #{tpu_custom_call.1} parent=23 // pred_region
          %s177 = smul.u32 2, %s20
          %p178 = scmp.lt.s32.totalorder %s21, 1
          %s179 = scalar_select %p178, %s21, 1
          %p180 = scmp.lt.s32.totalorder %s177, 1
          %s181 = scalar_select %p180, %s177, 1
          %s182 = smul.addr %s179, 4
          %s183 = sadd.s32 %s181, %s182
          %s184 = smul.addr %s183, 8
          %s185 = scalar_lea.vmem %s0, %s184
          %s186 = smul.u32 2, %s20
        $region28: #{tpu_custom_call.1} parent=23 // pred_fallthru
          _
        // Predicated region
        $region29: #{tpu_custom_call.1} parent=23 // pred_check
          %p187 = pneg %p73
        $region30: #{tpu_custom_call.1} parent=23 // pred_check_branch
          %189 = sbr.rel (%p187) target = $region32
        $region31: #{tpu_custom_call.1} parent=23 // pred_region
          %p190 = scmp.lt.s32.totalorder %s21, 1
          %s191 = scalar_select %p190, %s21, 1
          %s192 = scalar_lea.vmem %s1, %s191
        $region32: #{tpu_custom_call.1} parent=23 // pred_fallthru
          _
      $region24: #{tpu_custom_call.1} parent=5 // pred_fallthru
        _
      %p193 = scmp.le.s32.totalorder 1, %s13
      %p194 = scmp.lt.s32.totalorder %s13, 3
      %p195 = pnand %p193, %p194
      %p196 = pneg %p195
      // Predicated region
      $region33: #{tpu_custom_call.1} parent=5 // pred_check
        _
      $region34: #{tpu_custom_call.1} parent=5 // pred_check_branch
        %198 = sbr.rel (%p195) target = $region36
      $region35: #{tpu_custom_call.1} parent=5 // pred_region
        %s199 = ssub.s32 %s13, 1
        %s200 = smul.u32 2, %s22
        %p201 = scmp.lt.s32.totalorder %s23, 1
        %s202 = scalar_select %p201, %s23, 1
        %p203 = scmp.lt.s32.totalorder %s200, 1
        %s204 = scalar_select %p203, %s200, 1
        %s205 = smul.addr %s202, 4
        %s206 = sadd.s32 %s204, %s205
        %s207 = smul.addr %s206, 8
        %s208 = scalar_lea.vmem %s0, %s207
        %p209 = pneg %p53
        %p210 = pneg %p50
        %p211 = scmp.lt.s32.totalorder %s23, 1
        %s212 = scalar_select %p211, %s23, 1
        %s213 = scalar_lea.vmem %s1, %s212
        %p214 = pneg %p79
        %p215 = pneg %p76
        %p216 = pneg %p100
        %p217 = pneg %p97
        %p218 = pneg %p121
        %p219 = pneg %p118
        %p220 = pneg %p149
        %p221 = pneg %p146
        %s222 = sand.u32 %s136, 1
        %s223 = scalar_lea.sflag [#allocation3], %s222
        %s224 = sand.u32 %s136, 1
        %s225 = smul.addr %s224, 64
        %s226 = scalar_lea.vmem [#allocation2], %s225
        %s227 = smul.u32 2, %s22
        %p228 = scmp.lt.s32.totalorder %s23, 1
        %s229 = scalar_select %p228, %s23, 1
        %p230 = scmp.lt.s32.totalorder %s227, 1
        %s231 = scalar_select %p230, %s227, 1
        %s232 = smul.addr %s229, 4
        %s233 = sadd.s32 %s231, %s232
        %s234 = smul.addr %s233, 8
        %s235 = scalar_lea.vmem %s0, %s234
        %s236 = smul.u32 2, %s22
        %p237 = scmp.lt.s32.totalorder %s23, 1
        %s238 = scalar_select %p237, %s23, 1
        %s239 = scalar_lea.vmem %s1, %s238
        %s240 = smul.u32 2, %s22
        %v241 = vld [vmem:[%s2] sm:$0xff]
        %v242 = vld [vmem:[%s2 + $0x8] sm:$0xff]
        %v243 = vld [vmem:[%s2 + $0x10] sm:$0xff]
        %v244 = vld [vmem:[%s2 + $0x18] sm:$0xff]
        %v245 = vld [vmem:[%s2 + $0x20] sm:$0xff]
        %v246 = vld [vmem:[%s2 + $0x28] sm:$0xff]
        %v247 = vld [vmem:[%s2 + $0x30] sm:$0xff]
        %v248 = vld [vmem:[%s2 + $0x38] sm:$0xff]
        %v249 = vld [vmem:[%s235] sm:$0xff]
        %v250 = vld [vmem:[%s235 + $0x8] sm:$0xff]
        %v251 = vld [vmem:[%s235 + $0x10] sm:$0xff]
        %v252 = vld [vmem:[%s235 + $0x18] sm:$0xff]
        %v253 = vld [vmem:[%s3] sm:$0xff]
        %v254 = vld [vmem:[%s3 + $0x8] sm:$0xff]
        %v255 = vld [vmem:[%s3 + $0x10] sm:$0xff]
        %v256 = vld [vmem:[%s3 + $0x18] sm:$0xff]
        %v257 = vld [vmem:[%s3 + $0x20] sm:$0xff]
        %v258 = vld [vmem:[%s3 + $0x28] sm:$0xff]
        %v259 = vld [vmem:[%s3 + $0x30] sm:$0xff]
        %v260 = vld [vmem:[%s3 + $0x38] sm:$0xff]
        %262 = vset.pattern.permute.xlu0 0
        %263 = vperm.xlu0 %262, %v253
        %v264 = vpop.permute.xlu0 %263
        %267 = vset.pattern.permute.xlu0 0
        %268 = vperm.xlu0 %267, %v254
        %v269 = vpop.permute.xlu0 %268
        %272 = vset.pattern.permute.xlu0 0
        %273 = vperm.xlu0 %272, %v255
        %v274 = vpop.permute.xlu0 %273
        %277 = vset.pattern.permute.xlu0 0
        %278 = vperm.xlu0 %277, %v256
        %v279 = vpop.permute.xlu0 %278
        %282 = vset.pattern.permute.xlu0 0
        %283 = vperm.xlu0 %282, %v257
        %v284 = vpop.permute.xlu0 %283
        %287 = vset.pattern.permute.xlu0 0
        %288 = vperm.xlu0 %287, %v258
        %v289 = vpop.permute.xlu0 %288
        %292 = vset.pattern.permute.xlu0 0
        %293 = vperm.xlu0 %292, %v259
        %v294 = vpop.permute.xlu0 %293
        %297 = vset.pattern.permute.xlu0 0
        %298 = vperm.xlu0 %297, %v260
        %v299 = vpop.permute.xlu0 %298
        %vm301 = vcmask 130048
        %v303 = vsel %vm301, %v241, 0
        %v306 = vsel %vm301, %v242, 0
        %v309 = vsel %vm301, %v243, 0
        %v312 = vsel %vm301, %v244, 0
        %v315 = vsel %vm301, %v245, 0
        %v318 = vsel %vm301, %v246, 0
        %v321 = vsel %vm301, %v247, 0
        %v324 = vsel %vm301, %v248, 0
        %326 = vmatprep.subr.mxu0 0.0
        %327 = vmatpush1.msra.mxu0 0.0
        %328 = vmatprep.subr.mxu0 0.0
        %329 = vmatpush1.msra.mxu0 0.0
        %330 = vmatprep.subr.mxu0 0.0
        %331 = vmatpush1.msra.mxu0 0.0
        %332 = vmatprep.subr.mxu0 0.0
        %333 = vmatpush1.msra.mxu0 0.0
        %334 = vmatprep.subr.mxu0 0.0
        %335 = vmatpush1.msra.mxu0 0.0
        %336 = vmatprep.subr.mxu0 0.0
        %337 = vmatpush1.msra.mxu0 0.0
        %338 = vmatprep.subr.mxu0 0.0
        %339 = vmatpush1.msra.mxu0 0.0
        %340 = vmatprep.subr.mxu0 0.0
        %341 = vmatpush1.msra.mxu0 0.0
        %342 = vmatprep.subr.mxu0 0.0
        %343 = vmatpush1.msra.mxu0 0.0
        %344 = vmatprep.subr.mxu0 0.0
        %345 = vmatpush1.msra.mxu0 0.0
        %346 = vmatprep.subr.mxu0 0.0
        %347 = vmatpush1.msra.mxu0 0.0
        %348 = vmatprep.subr.mxu0 0.0
        %349 = vmatpush1.msra.mxu0 0.0
        %350 = vmatprep.subr.mxu0 0.0
        %351 = vmatpush1.msra.mxu0 0.0
        %352 = vmatprep.subr.mxu0 0.0
        %353 = vmatpush1.msra.mxu0 0.0
        %354 = vmatprep.subr.mxu0 %v252
        %355 = vmatpush1.msra.mxu0 %v251
        %356 = vmatprep.subr.mxu0 %v250
        %357 = vmatpush1.msra.mxu0 %v249
        %358 = vmatprep.subr.mxu0 0.0
        %359 = vmatpush2.msra.mxu0 0.0
        %360 = vmatprep.subr.mxu0 0.0
        %361 = vmatpush2.msra.mxu0 0.0
        %362 = vmatprep.subr.mxu0 0.0
        %363 = vmatpush2.msra.mxu0 0.0
        %364 = vmatprep.subr.mxu0 0.0
        %365 = vmatpush2.msra.mxu0 0.0
        %366 = vmatprep.subr.mxu0 0.0
        %367 = vmatpush2.msra.mxu0 0.0
        %368 = vmatprep.subr.mxu0 0.0
        %369 = vmatpush2.msra.mxu0 0.0
        %370 = vmatprep.subr.mxu0 0.0
        %371 = vmatpush2.msra.mxu0 0.0
        %372 = vmatprep.subr.mxu0 0.0
        %373 = vmatpush2.msra.mxu0 0.0
        %374 = vmatprep.subr.mxu0 0.0
        %375 = vmatpush2.msra.mxu0 0.0
        %376 = vmatprep.subr.mxu0 0.0
        %377 = vmatpush2.msra.mxu0 0.0
        %378 = vmatprep.subr.mxu0 0.0
        %379 = vmatpush2.msra.mxu0 0.0
        %380 = vmatprep.subr.mxu0 0.0
        %381 = vmatpush2.msra.mxu0 0.0
        %382 = vmatprep.subr.mxu0 0.0
        %383 = vmatpush2.msra.mxu0 0.0
        %384 = vmatprep.subr.mxu0 0.0
        %385 = vmatpush2.msra.mxu0 0.0
        %386 = vmatprep.subr.mxu0 0.0
        %387 = vmatpush2.msra.mxu0 0.0
        %388 = vmatprep.subr.mxu0 0.0
        %389 = vmatpush2.msra.mxu0 0.0
        %390 = vmatprep.mubr.f32.mxu0 0.0
        %391 = vmatmul.mubr.f32.gmra.mxu0 %v303
        %v392 = vpop.f32.mrf.mxu0
        %v393 = vadd.f32 %v264, %v392
        %v394 = vpop.f32.mrf.mxu0
        %v395 = vadd.f32 %v264, %v394
        %396 = vmatprep.mubr.f32.mxu0 0.0
        %397 = vmatmul.mubr.f32.gmra.mxu0 %v306
        %v398 = vpop.f32.mrf.mxu0
        %v399 = vadd.f32 %v269, %v398
        %v400 = vpop.f32.mrf.mxu0
        %v401 = vadd.f32 %v269, %v400
        %402 = vmatprep.mubr.f32.mxu0 0.0
        %403 = vmatmul.mubr.f32.gmra.mxu0 %v309
        %v404 = vpop.f32.mrf.mxu0
        %v405 = vadd.f32 %v274, %v404
        %v406 = vpop.f32.mrf.mxu0
        %v407 = vadd.f32 %v274, %v406
        %408 = vmatprep.mubr.f32.mxu0 0.0
        %409 = vmatmul.mubr.f32.gmra.mxu0 %v312
        %v410 = vpop.f32.mrf.mxu0
        %v411 = vadd.f32 %v279, %v410
        %v412 = vpop.f32.mrf.mxu0
        %v413 = vadd.f32 %v279, %v412
        %414 = vmatprep.mubr.f32.mxu0 0.0
        %415 = vmatmul.mubr.f32.gmra.mxu0 %v315
        %v416 = vpop.f32.mrf.mxu0
        %v417 = vadd.f32 %v284, %v416
        %v418 = vpop.f32.mrf.mxu0
        %v419 = vadd.f32 %v284, %v418
        %420 = vmatprep.mubr.f32.mxu0 0.0
        %421 = vmatmul.mubr.f32.gmra.mxu0 %v318
        %v422 = vpop.f32.mrf.mxu0
        %v423 = vadd.f32 %v289, %v422
        %v424 = vpop.f32.mrf.mxu0
        %v425 = vadd.f32 %v289, %v424
        %426 = vmatprep.mubr.f32.mxu0 0.0
        %427 = vmatmul.mubr.f32.gmra.mxu0 %v321
        %v428 = vpop.f32.mrf.mxu0
        %v429 = vadd.f32 %v294, %v428
        %v430 = vpop.f32.mrf.mxu0
        %v431 = vadd.f32 %v294, %v430
        %432 = vmatprep.mubr.f32.mxu0 0.0
        %433 = vmatmul.mubr.f32.gmra.mxu0 %v324
        %v434 = vpop.f32.mrf.mxu0
        %v435 = vadd.f32 %v299, %v434
        %v436 = vpop.f32.mrf.mxu0
        %v437 = vadd.f32 %v299, %v436
        %438 = vdwg.mxu0
        %v439 = vmax.f32 %v393, 0.0
        %v440 = vmax.f32 %v395, 0.0
        %v441 = vmax.f32 %v399, 0.0
        %v442 = vmax.f32 %v401, 0.0
        %v443 = vmax.f32 %v405, 0.0
        %v444 = vmax.f32 %v407, 0.0
        %v445 = vmax.f32 %v411, 0.0
        %v446 = vmax.f32 %v413, 0.0
        %v447 = vmax.f32 %v417, 0.0
        %v448 = vmax.f32 %v419, 0.0
        %v449 = vmax.f32 %v423, 0.0
        %v450 = vmax.f32 %v425, 0.0
        %v451 = vmax.f32 %v429, 0.0
        %v452 = vmax.f32 %v431, 0.0
        %v453 = vmax.f32 %v435, 0.0
        %v454 = vmax.f32 %v437, 0.0
        %v455 = vld [vmem:[%s239] sm:$0x1]
        %v457 = vlaneseq
        %v458 = vshrl.u32 %v457, 7
        %v459 = vsub.s32 0, %v458
        %v460 = vrot.slane %v455, %v459
        %vm461 = vcmask 261120
        %v462 = vsel %vm461, %v460, 0
        %464 = vmatprep.subr.mxu0 0.0
        %465 = vmatpush1.msra.mxu0 0.0
        %466 = vmatprep.subr.mxu0 0.0
        %467 = vmatpush1.msra.mxu0 0.0
        %468 = vmatprep.subr.mxu0 0.0
        %469 = vmatpush1.msra.mxu0 0.0
        %470 = vmatprep.subr.mxu0 0.0
        %471 = vmatpush1.msra.mxu0 0.0
        %472 = vmatprep.subr.mxu0 0.0
        %473 = vmatpush1.msra.mxu0 0.0
        %474 = vmatprep.subr.mxu0 0.0
        %475 = vmatpush1.msra.mxu0 0.0
        %476 = vmatprep.subr.mxu0 0.0
        %477 = vmatpush1.msra.mxu0 0.0
        %478 = vmatprep.subr.mxu0 0.0
        %479 = vmatpush1.msra.mxu0 0.0
        %480 = vmatprep.subr.mxu0 0.0
        %481 = vmatpush1.msra.mxu0 0.0
        %482 = vmatprep.subr.mxu0 0.0
        %483 = vmatpush1.msra.mxu0 0.0
        %484 = vmatprep.subr.mxu0 0.0
        %485 = vmatpush1.msra.mxu0 0.0
        %486 = vmatprep.subr.mxu0 0.0
        %487 = vmatpush1.msra.mxu0 0.0
        %488 = vmatprep.subr.mxu0 %v446
        %489 = vmatpush1.msra.mxu0 %v445
        %490 = vmatprep.subr.mxu0 %v444
        %491 = vmatpush1.msra.mxu0 %v443
        %492 = vmatprep.subr.mxu0 %v442
        %493 = vmatpush1.msra.mxu0 %v441
        %494 = vmatprep.subr.mxu0 %v440
        %495 = vmatpush1.msra.mxu0 %v439
        %496 = vmatprep.subr.mxu0 0.0
        %497 = vmatpush2.msra.mxu0 0.0
        %498 = vmatprep.subr.mxu0 0.0
        %499 = vmatpush2.msra.mxu0 0.0
        %500 = vmatprep.subr.mxu0 0.0
        %501 = vmatpush2.msra.mxu0 0.0
        %502 = vmatprep.subr.mxu0 0.0
        %503 = vmatpush2.msra.mxu0 0.0
        %504 = vmatprep.subr.mxu0 0.0
        %505 = vmatpush2.msra.mxu0 0.0
        %506 = vmatprep.subr.mxu0 0.0
        %507 = vmatpush2.msra.mxu0 0.0
        %508 = vmatprep.subr.mxu0 0.0
        %509 = vmatpush2.msra.mxu0 0.0
        %510 = vmatprep.subr.mxu0 0.0
        %511 = vmatpush2.msra.mxu0 0.0
        %512 = vmatprep.subr.mxu0 0.0
        %513 = vmatpush2.msra.mxu0 0.0
        %514 = vmatprep.subr.mxu0 0.0
        %515 = vmatpush2.msra.mxu0 0.0
        %516 = vmatprep.subr.mxu0 0.0
        %517 = vmatpush2.msra.mxu0 0.0
        %518 = vmatprep.subr.mxu0 0.0
        %519 = vmatpush2.msra.mxu0 0.0
        %520 = vmatprep.subr.mxu0 0.0
        %521 = vmatpush2.msra.mxu0 0.0
        %522 = vmatprep.subr.mxu0 0.0
        %523 = vmatpush2.msra.mxu0 0.0
        %524 = vmatprep.subr.mxu0 0.0
        %525 = vmatpush2.msra.mxu0 0.0
        %526 = vmatprep.subr.mxu0 0.0
        %527 = vmatpush2.msra.mxu0 0.0
        %528 = vmatprep.mubr.f32.mxu0 0.0
        %529 = vmatmul.mubr.f32.gmra.mxu0 %v462
        %v530 = vpop.f32.mrf.mxu0
        %v531 = vadd.f32 0.0, %v530
        %v532 = vpop.f32.mrf.mxu0
        %v533 = vadd.f32 0.0, %v532
        %534 = vdwg.mxu0
        %v535 = vxor.u32 %v531, 2147483648
        %v536 = vxor.u32 %v533, 2147483648
        %v537 = vmul.f32 %v535, 1.442695
        %v538 = vpow.pop %v537
        %v539 = vmul.f32 %v536, 1.442695
        %v540 = vpow.pop %v539
        %v541 = vadd.f32 %v538, 1.0
        %v542 = vadd.f32 %v540, 1.0
        %v543 = vrcp.pop %v541
        %v544 = vmul.f32 1.0, %v543
        %v545 = vrcp.pop %v542
        %v546 = vmul.f32 1.0, %v545
        %v547 = vlaneseq
        %v548 = vshrl.u32 %v547, 7
        %v549 = vsub.s32 0, %v548
        %v550 = vrot.slane %v544, %v549
        %v551 = vlaneseq
        %v552 = vshrl.u32 %v551, 7
        %v553 = vsub.s32 0, %v552
        %v554 = vrot.slane %v546, %v553
        %v555 = vmul.f32 %v550, %v447
        %v556 = vmul.f32 %v554, %v448
        %v557 = vmul.f32 %v550, %v449
        %v558 = vmul.f32 %v554, %v450
        %v559 = vmul.f32 %v550, %v451
        %v560 = vmul.f32 %v554, %v452
        %v561 = vmul.f32 %v550, %v453
        %v562 = vmul.f32 %v554, %v454
        %563 = vst [vmem:[%s226] sm:$0xff] %v555
        %564 = vst [vmem:[%s226 + $0x8] sm:$0xff] %v556
        %565 = vst [vmem:[%s226 + $0x10] sm:$0xff] %v557
        %566 = vst [vmem:[%s226 + $0x18] sm:$0xff] %v558
        %567 = vst [vmem:[%s226 + $0x20] sm:$0xff] %v559
        %568 = vst [vmem:[%s226 + $0x28] sm:$0xff] %v560
        %569 = vst [vmem:[%s226 + $0x30] sm:$0xff] %v561
        %570 = vst [vmem:[%s226 + $0x38] sm:$0xff] %v562
        %s571 = sand.u32 %s136, 1
        %s572 = scalar_lea.sflag [#allocation3], %s571
        %s573 = sand.u32 %s136, 1
        %s574 = smul.addr %s573, 64
        %s575 = scalar_lea.vmem [#allocation2], %s574
        // Predicated region
        $region37: #{tpu_custom_call.1} parent=35 // pred_check
          %p576 = pneg %p146
        $region38: #{tpu_custom_call.1} parent=35 // pred_check_branch
          %578 = sbr.rel (%p576) target = $region40
        $region39: #{tpu_custom_call.1} parent=35 // pred_region
          %s579 = smul.u32 2, %s22
          %s581 = ssub.s32 1024, 1024
          %582 = vsyncadd %s572, %s581
          %s583 = smul.addr %s23, 8
          %s584 = sadd.s32 %s579, %s583
          %s585 = smul.addr %s584, 128
          %s586 = scalar_lea.hbm %s4, %s585
          %s587 = sshll.u32 %s575, 4
          %s588 = int_to_ptr.vmem [resolvable:$true] %s587
          %593 = dma.vmem_to_hbm [thread:$0]  %s588, 1024, %s586, %s572, 256, 256, 16
        $region40: #{tpu_custom_call.1} parent=35 // pred_fallthru
          _
      $region36: #{tpu_custom_call.1} parent=5 // pred_fallthru
        _
      %p594 = scmp.le.s32.totalorder 2, %s13
      // Predicated region
      $region41: #{tpu_custom_call.1} parent=5 // pred_check
        %p595 = pneg %p594
      $region42: #{tpu_custom_call.1} parent=5 // pred_check_branch
        %597 = sbr.rel (%p595) target = $region44
      $region43: #{tpu_custom_call.1} parent=5 // pred_region
        %s598 = ssub.s32 %s13, 2
        // Predicated region
        $region45: #{tpu_custom_call.1} parent=43 // pred_check
          %p599 = pneg %p152
        $region46: #{tpu_custom_call.1} parent=43 // pred_check_branch
          %601 = sbr.rel (%p599) target = $region48
        $region47: #{tpu_custom_call.1} parent=43 // pred_region
          %s602 = sand.u32 %s137, 1
          %s603 = scalar_lea.sflag [#allocation3], %s602
          %s604 = sand.u32 %s137, 1
          %s605 = smul.addr %s604, 64
          %s606 = scalar_lea.vmem [#allocation2], %s605
          %607 = dma.done %s603, 1024
        $region48: #{tpu_custom_call.1} parent=43 // pred_fallthru
          _
      $region44: #{tpu_custom_call.1} parent=5 // pred_fallthru
        _
    $region6: #{tpu_custom_call.1} parent=1 // loop_footer
      %s17 = sadd.s32 1, %s13
    $region7: #{tpu_custom_call.1} parent=1 // loop_footer_branch
      %12 = sbr.rel target = $region3
    $region8: #{tpu_custom_call.1} parent=1 // loop_exit
      _
    %608 = vsyncpa [#allocation3], 1
    %s609 = scalar_lea.sflag [#allocation3], 1
    %610 = vsyncpa %s609, 1

</llo_original>
